<compile_context>
chip_gen: v6e
topology: v6e:2x2x1
jax: 0.10.0
libtpu: 0.0.40
codegen_flags: <defaults>
</compile_context>

<pallas_src>
import functools

import jax
import jax.numpy as jnp
from jax import lax
from jax.experimental import pallas as pl
from jax.experimental.pallas import tpu as pltpu

LANE = 128


def _cdiv(a, b):
    return -(-a // b)


def _vmem_params():
    """Generation-aware (vmem_limit_bytes, per-step tile budget in bytes)."""
    try:
        cap = int(pltpu.get_tpu_info().vmem_capacity_bytes)
    except Exception:  # older jax / detection failure -> conservative (v7x-safe)
        cap = 64 * 1024 * 1024
    if cap >= 96 * 1024 * 1024:
        # v5e / v6e: 128 MiB physical VMEM -> big scoped request, 24 MiB per step.
        return 64 * 1024 * 1024, 24 * 1024 * 1024
    # v7x: 64 MiB per TensorCore -> stay well below physical, 16 MiB per step.
    return 44 * 1024 * 1024, 16 * 1024 * 1024


def _per_elem_bytes(itemsize):
    # in + out double-buffered in the native dtype, plus ~3 tile-sized f32
    # temporaries inside the kernel (xf, gate, product).
    return 4 * itemsize + 3 * 4


def _sigmoid(v):
    # Explicit form; lowers to VPU + EUP exp only.
    return 1.0 / (1.0 + jnp.exp(-v))


# --------------------------- fused single-pass kernel ---------------------------
def _scse_fused_kernel(x_ref, w1_ref, b1_ref, w2t_ref, b2_ref, ws_ref, bs_ref, o_ref):
    """One grid step == b_tile whole images: pool + cSE MLP + sSE + combine."""
    xf = x_ref[...].astype(jnp.float32)              # (B, C, HW), upcast once
    _, c, hw = xf.shape

    # cSE: global average pool + tiny 2-layer MLP + sigmoid (VPU/XLU only, no MXU).
    pooled = jnp.sum(xf, axis=2) * (1.0 / hw)        # (B, C)
    w1 = w1_ref[...]                                 # (Cr, C)
    z1 = jnp.sum(pooled[:, None, :] * w1[None, :, :], axis=2) + b1_ref[...]   # (B, Cr)
    z1 = jnp.maximum(z1, 0.0)
    w2t = w2t_ref[...]                               # (Cr, C) == conv2 weight transposed
    z2 = jnp.sum(z1[:, :, None] * w2t[None, :, :], axis=1) + b2_ref[...]      # (B, C)
    c_gate = _sigmoid(z2)[:, :, None]                # (B, C, 1)

    # sSE: 1x1 conv C->1 per pixel == weighted channel (sublane) reduce.
    ws = ws_ref[...].reshape(1, c, 1)                # (1, C, 1)
    s = jnp.sum(xf * ws, axis=1, keepdims=True) + bs_ref[0]                   # (B, 1, HW)
    s_gate = _sigmoid(s)

    # Fused combine: x*cSE(x) + x*sSE(x) == x*(c_gate + s_gate); cast only at store.
    o_ref[...] = (xf * (c_gate + s_gate)).astype(o_ref.dtype)


# --------------------------- two-pass streaming kernels --------------------------
def _make_pool_sum_kernel(hw_total, t_hw):
    mask_needed = (hw_total % t_hw) != 0

    def kernel(x_ref, sum_ref):
        @pl.when(pl.program_id(2) == 0)
        def _():
            sum_ref[...] = jnp.zeros_like(sum_ref)

        xf = x_ref[...].astype(jnp.float32)          # (1, c_tile, t_hw)
        if mask_needed:
            # The last HW tile overruns the (unpadded) array; OOB lanes hold
            # unspecified data and must not perturb the pooled sum.
            valid = hw_total - pl.program_id(2) * t_hw
            lane = lax.broadcasted_iota(jnp.int32, xf.shape, 2)
            xf = jnp.where(lane < valid, xf, 0.0)
        sum_ref[...] += jnp.sum(xf, axis=2, keepdims=True)

    return kernel


def _scse_apply_kernel(x_ref, cgate_ref, ws_ref, bs_ref, o_ref):
    """Streaming pass 2: sSE gate + fused combine on one (1, C, t_hw) tile."""
    xf = x_ref[...].astype(jnp.float32)              # upcast once, reused below
    c = xf.shape[1]
    ws = ws_ref[...].reshape(1, c, 1)                # (1, C, 1)
    s = jnp.sum(xf * ws, axis=1, keepdims=True) + bs_ref[0]      # (1, 1, t_hw)
    gate = cgate_ref[...] + _sigmoid(s)              # (1,C,1)+(1,1,t) -> (1,C,t)
    # OOB lanes of the ragged edge tile hold junk, but the edge store is masked.
    o_ref[...] = (xf * gate).astype(o_ref.dtype)


# ------------------------------- tile selection ----------------------------------
def _choose_batch_tile(n, per_image_bytes, step_budget):
    b_cap = max(1, step_budget // max(per_image_bytes, 1))
    b_tile = 1
    for d in range(min(n, b_cap), 0, -1):
        if n % d == 0:
            b_tile = d
            break
    # Keep at least two grid steps when possible so both v7x TensorCores get work.
    if b_tile == n and n >= 2:
        for d in range(n // 2, 0, -1):
            if n % d == 0:
                b_tile = d
                break
    return b_tile


def _choose_hw_tile(c, hw, per_elem, step_budget, max_hw_tile):
    cap = max(LANE, (step_budget // (c * per_elem)) // LANE * LANE)
    if max_hw_tile is not None:
        cap = min(cap, max(LANE, (max_hw_tile // LANE) * LANE))
    hw128 = _cdiv(hw, LANE) * LANE
    return min(cap, hw128)


def _choose_c_tile(c, n_batch):
    # Split C across a second "parallel" grid axis only when batch alone cannot
    # feed both v7x TensorCores.
    if n_batch >= 2 or c < 16 or c % 16 != 0:
        return c
    return c // 2


# ----------------------------------- forward -------------------------------------
@functools.partial(jax.jit, static_argnames=("force_two_pass", "max_hw_tile"))
def scse_forward(x_nchw, w1, b1, w2, b2, ws, bs, *,
                 force_two_pass=False, max_hw_tile=None):
    """SCSE forward: x * cSE(x) + x * sSE(x).

    Params use PyTorch 1x1-conv shapes flattened to 2D:
      w1 (Cr, C), b1 (Cr, 1), w2 (C, Cr), b2 (C, 1), ws (1, C), bs (1, 1).
    """
    N, C, H, W = x_nchw.shape
    HW = H * W
    Cr = w1.shape[0]
    x = x_nchw.reshape(N, C, HW)

    vmem_limit, step_budget = _vmem_params()
    per_elem = _per_elem_bytes(x.dtype.itemsize)

    # Gate-math params, laid out for the kernels (all tiny, always f32).
    f32 = jnp.float32
    w1f = w1.astype(f32)                  # (Cr, C)
    b1f = b1.astype(f32).reshape(1, Cr)   # (1, Cr)
    w2t = w2.astype(f32).T                # (Cr, C)
    b2f = b2.astype(f32).reshape(1, C)    # (1, C)
    ws_col = ws.astype(f32).reshape(C, 1)  # (C, 1), sublane layout
    bs_s = bs.astype(f32).reshape(1)      # scalar bias -> SMEM

    per_image = C * HW * per_elem
    fused = (not force_two_pass) and per_image <= step_budget

    if fused:
        # -------- fused single-pass: pool + cSE MLP + sSE + combine per image ----
        b_tile = _choose_batch_tile(N, per_image, step_budget)
        n_b = N // b_tile
        out = pl.pallas_call(
            _scse_fused_kernel,
            out_shape=jax.ShapeDtypeStruct((N, C, HW), x.dtype),
            grid_spec=pltpu.PrefetchScalarGridSpec(
                num_scalar_prefetch=0,
                grid=(n_b,),
                in_specs=[
                    pl.BlockSpec((b_tile, C, HW), lambda b: (b, 0, 0)),   # x
                    pl.BlockSpec((Cr, C), lambda b: (0, 0)),              # w1
                    pl.BlockSpec((1, Cr), lambda b: (0, 0)),              # b1
                    pl.BlockSpec((Cr, C), lambda b: (0, 0)),              # w2^T
                    pl.BlockSpec((1, C), lambda b: (0, 0)),               # b2
                    pl.BlockSpec((C, 1), lambda b: (0, 0)),               # ws
                    pl.BlockSpec(memory_space=pltpu.MemorySpace.SMEM),    # bs
                ],
                out_specs=pl.BlockSpec((b_tile, C, HW), lambda b: (b, 0, 0)),
            ),
            input_output_aliases={0: 0},   # x is dead after this call
            compiler_params=pltpu.CompilerParams(
                dimension_semantics=("parallel",),
                vmem_limit_bytes=vmem_limit),
        )(x, w1f, b1f, w2t, b2f, ws_col, bs_s)
        return out.reshape(N, C, H, W)

    # ---------------- two-pass streaming fallback (large images) -----------------
    t_hw = _choose_hw_tile(C, HW, per_elem, step_budget, max_hw_tile)
    n_hw = _cdiv(HW, t_hw)
    c_tile = _choose_c_tile(C, N)
    n_c = C // c_tile

    # pass 1: pooled SUM over HW (ragged edge masked in-kernel), f32 accumulation.
    pooled_sum = pl.pallas_call(
        _make_pool_sum_kernel(HW, t_hw),
        out_shape=jax.ShapeDtypeStruct((N, C, 1), jnp.float32),
        grid_spec=pltpu.PrefetchScalarGridSpec(
            num_scalar_prefetch=0,
            grid=(N, n_c, n_hw),
            in_specs=[pl.BlockSpec((1, c_tile, t_hw), lambda b, c, h: (b, c, h))],
            out_specs=pl.BlockSpec((1, c_tile, 1), lambda b, c, h: (b, c, 0)),
        ),
        compiler_params=pltpu.CompilerParams(
            dimension_semantics=("parallel", "parallel", "arbitrary"),
            vmem_limit_bytes=vmem_limit),
    )(x)

    # Tiny cSE MLP in plain JAX (off the per-step critical path).
    pooled = pooled_sum[:, :, 0] * (1.0 / HW)          # divide by TRUE H*W  (N, C)
    z1 = jnp.maximum(pooled @ w1f.T + b1f, 0.0)        # (N, Cr)
    z2 = z1 @ w2t + b2f                                # (N, C)
    c_gate = jax.nn.sigmoid(z2)[:, :, None]            # (N, C, 1) f32

    # pass 2: sSE gate + fused combine, streaming over HW tiles, fully parallel.
    out = pl.pallas_call(
        _scse_apply_kernel,
        out_shape=jax.ShapeDtypeStruct((N, C, HW), x.dtype),
        grid_spec=pltpu.PrefetchScalarGridSpec(
            num_scalar_prefetch=0,
            grid=(N, n_hw),
            in_specs=[
                pl.BlockSpec((1, C, t_hw), lambda b, h: (b, 0, h)),   # x
                pl.BlockSpec((1, C, 1), lambda b, h: (b, 0, 0)),      # c_gate
                pl.BlockSpec((C, 1), lambda b, h: (0, 0)),            # ws
                pl.BlockSpec(memory_space=pltpu.MemorySpace.SMEM),    # bs
            ],
            out_specs=pl.BlockSpec((1, C, t_hw), lambda b, h: (b, 0, h)),
        ),
        input_output_aliases={0: 0},       # x is dead after pass 2
        compiler_params=pltpu.CompilerParams(
            dimension_semantics=("parallel", "parallel"),
            vmem_limit_bytes=vmem_limit),
    )(x, c_gate, ws_col, bs_s)
    # TODO(synk): tile C in the apply kernel (accumulate the sSE channel sum over
    # C-tiles in VMEM scratch) for very large channel counts (C >~ 2K).
    return out.reshape(N, C, H, W)


def scse_reference(x_nchw, w1, b1, w2, b2, ws, bs):
    """Pure-JAX reference mirroring the PyTorch forward."""
    xf = x_nchw.astype(jnp.float32)
    pooled = jnp.mean(xf, axis=(2, 3))                              # (N, C)
    z1 = jnp.maximum(pooled @ w1.T + b1[:, 0], 0.0)                 # (N, Cr)
    z2 = z1 @ w2.T + b2[:, 0]                                       # (N, C)
    c_gate = jax.nn.sigmoid(z2)[:, :, None, None]                   # (N, C, 1, 1)
    s = jnp.einsum('nchw,oc->nohw', xf, ws) + bs[0, 0]              # (N, 1, H, W)
    s_gate = jax.nn.sigmoid(s)
    return (xf * c_gate + xf * s_gate).astype(x_nchw.dtype)


if __name__ == "__main__":
    # in_channels must satisfy in_channels // reduction >= 1: C=32, reduction=16.
    N, C, H, W = 2, 32, 16, 16
    reduction = 16
    Cr = C // reduction

    key = jax.random.PRNGKey(0)
    kx, k1, k2, k3, k4, k5, k6, kx2 = jax.random.split(key, 8)

    x = jax.random.normal(kx, (N, C, H, W), dtype=jnp.float32)
    w1 = jax.random.normal(k1, (Cr, C), dtype=jnp.float32) * 0.2    # cSE conv1: C->Cr
    b1 = jax.random.normal(k2, (Cr, 1), dtype=jnp.float32) * 0.1
    w2 = jax.random.normal(k3, (C, Cr), dtype=jnp.float32) * 0.2    # cSE conv2: Cr->C
    b2 = jax.random.normal(k4, (C, 1), dtype=jnp.float32) * 0.1
    ws = jax.random.normal(k5, (1, C), dtype=jnp.float32) * 0.2     # sSE conv: C->1
    bs = jax.random.normal(k6, (1, 1), dtype=jnp.float32) * 0.1

    # Fused single-pass path (whole image fits the per-step VMEM budget).
    ref = scse_reference(x, w1, b1, w2, b2, ws, bs)
    out = jax.block_until_ready(scse_forward(x, w1, b1, w2, b2, ws, bs))
    assert out.shape == (N, C, H, W), out.shape
    assert jnp.allclose(out, ref, atol=1e-5, rtol=1e-5), \
        float(jnp.max(jnp.abs(out - ref)))

    # Two-pass streaming path with a ragged (non-multiple-of-128) HW and a forced
    # small HW tile: exercises in-kernel edge masking, the accumulating reduction
    # and the parallel C-split of pass 1 (batch = 1).
    N2, H2, W2 = 1, 18, 18                      # HW = 324
    x2 = jax.random.normal(kx2, (N2, C, H2, W2), dtype=jnp.float32)
    ref2 = scse_reference(x2, w1, b1, w2, b2, ws, bs)
    out2 = jax.block_until_ready(
        scse_forward(x2, w1, b1, w2, b2, ws, bs,
                     force_two_pass=True, max_hw_tile=128))
    assert out2.shape == (N2, C, H2, W2), out2.shape
    assert jnp.allclose(out2, ref2, atol=1e-5, rtol=1e-5), \
        float(jnp.max(jnp.abs(out2 - ref2)))

    print("KERNEL_OK")
</pallas_src>

<mosaic_0001>
module attributes {stable_mosaic.version = 11 : i64} {
  func.func @_scse_fused_kernel(%arg0: i32, %arg1: memref<1x32x256xf32, #tpu.memory_space<vmem>>, %arg2: memref<2x32xf32, #tpu.memory_space<vmem>>, %arg3: memref<1x2xf32, #tpu.memory_space<vmem>>, %arg4: memref<2x32xf32, #tpu.memory_space<vmem>>, %arg5: memref<1x32xf32, #tpu.memory_space<vmem>>, %arg6: memref<32x1xf32, #tpu.memory_space<vmem>>, %arg7: memref<1xf32, #tpu.memory_space<smem>>, %arg8: memref<1x32x256xf32, #tpu.memory_space<vmem>>) attributes {dimension_semantics = [#tpu.dimension_semantics<parallel>], iteration_bounds = array<i64: 2>, scalar_prefetch = 0 : i64, scratch_operands = 0 : i64, tpu.core_type = #tpu.core_type<tc>, window_params = [{transform_indices = @transform_0, window_bounds = array<i64: 1, 32, 256>}, {pipeline_mode = #tpu.pipeline_mode<synchronous>, transform_indices = @transform_1, window_bounds = array<i64: 2, 32>}, {pipeline_mode = #tpu.pipeline_mode<synchronous>, transform_indices = @transform_2, window_bounds = array<i64: 1, 2>}, {pipeline_mode = #tpu.pipeline_mode<synchronous>, transform_indices = @transform_3, window_bounds = array<i64: 2, 32>}, {pipeline_mode = #tpu.pipeline_mode<synchronous>, transform_indices = @transform_4, window_bounds = array<i64: 1, 32>}, {pipeline_mode = #tpu.pipeline_mode<synchronous>, transform_indices = @transform_5, window_bounds = array<i64: 32, 1>}, {transform_indices = @transform_6, window_bounds = array<i64: 1>}, {transform_indices = @transform_7, window_bounds = array<i64: 1, 32, 256>}]} {
    %c0 = arith.constant 0 : index
    %c0_0 = arith.constant 0 : index
    %c0_1 = arith.constant 0 : index
    %0 = vector.load %arg1[%c0, %c0_0, %c0_1] : memref<1x32x256xf32, #tpu.memory_space<vmem>>, vector<1x32x256xf32>
    %cst = arith.constant dense<0.000000e+00> : vector<1x32xf32>
    %1 = vector.multi_reduction <add>, %0, %cst [2] : vector<1x32x256xf32> to vector<1x32xf32>
    %cst_2 = arith.constant 3.906250e-03 : f32
    %2 = vector.broadcast %cst_2 : f32 to vector<1x32xf32>
    %3 = arith.mulf %1, %2 : vector<1x32xf32>
    %c0_3 = arith.constant 0 : index
    %c0_4 = arith.constant 0 : index
    %4 = vector.load %arg2[%c0_3, %c0_4] : memref<2x32xf32, #tpu.memory_space<vmem>>, vector<2x32xf32>
    %5 = vector.shape_cast %3 : vector<1x32xf32> to vector<1x1x32xf32>
    %6 = vector.shape_cast %4 : vector<2x32xf32> to vector<1x2x32xf32>
    %7 = vector.broadcast %5 : vector<1x1x32xf32> to vector<1x2x32xf32>
    %8 = arith.mulf %7, %6 : vector<1x2x32xf32>
    %cst_5 = arith.constant dense<0.000000e+00> : vector<1x2xf32>
    %9 = vector.multi_reduction <add>, %8, %cst_5 [2] : vector<1x2x32xf32> to vector<1x2xf32>
    %c0_6 = arith.constant 0 : index
    %c0_7 = arith.constant 0 : index
    %10 = vector.load %arg3[%c0_6, %c0_7] : memref<1x2xf32, #tpu.memory_space<vmem>>, vector<1x2xf32>
    %11 = arith.addf %9, %10 : vector<1x2xf32>
    %cst_8 = arith.constant 0.000000e+00 : f32
    %12 = vector.broadcast %cst_8 : f32 to vector<1x2xf32>
    %13 = arith.maximumf %11, %12 : vector<1x2xf32>
    %c0_9 = arith.constant 0 : index
    %c0_10 = arith.constant 0 : index
    %14 = vector.load %arg4[%c0_9, %c0_10] : memref<2x32xf32, #tpu.memory_space<vmem>>, vector<2x32xf32>
    %15 = vector.shape_cast %13 : vector<1x2xf32> to vector<1x2x1xf32>
    %16 = vector.shape_cast %14 : vector<2x32xf32> to vector<1x2x32xf32>
    %17 = vector.broadcast %15 : vector<1x2x1xf32> to vector<1x2x32xf32>
    %18 = arith.mulf %17, %16 : vector<1x2x32xf32>
    %cst_11 = arith.constant dense<0.000000e+00> : vector<1x32xf32>
    %19 = vector.multi_reduction <add>, %18, %cst_11 [1] : vector<1x2x32xf32> to vector<1x32xf32>
    %c0_12 = arith.constant 0 : index
    %c0_13 = arith.constant 0 : index
    %20 = vector.load %arg5[%c0_12, %c0_13] : memref<1x32xf32, #tpu.memory_space<vmem>>, vector<1x32xf32>
    %21 = arith.addf %19, %20 : vector<1x32xf32>
    %cst_14 = arith.constant 0.000000e+00 : f32
    %22 = vector.broadcast %cst_14 : f32 to vector<1x32xf32>
    %23 = arith.subf %22, %21 : vector<1x32xf32>
    %24 = math.exp %23 : vector<1x32xf32>
    %cst_15 = arith.constant 1.000000e+00 : f32
    %25 = vector.broadcast %cst_15 : f32 to vector<1x32xf32>
    %26 = arith.addf %25, %24 : vector<1x32xf32>
    %cst_16 = arith.constant 1.000000e+00 : f32
    %27 = vector.broadcast %cst_16 : f32 to vector<1x32xf32>
    %28 = arith.divf %27, %26 : vector<1x32xf32>
    %29 = vector.shape_cast %28 : vector<1x32xf32> to vector<1x32x1xf32>
    %c0_17 = arith.constant 0 : index
    %c0_18 = arith.constant 0 : index
    %30 = vector.load %arg6[%c0_17, %c0_18] : memref<32x1xf32, #tpu.memory_space<vmem>>, vector<32x1xf32>
    %31 = vector.shape_cast %30 : vector<32x1xf32> to vector<1x32x1xf32>
    %32 = vector.broadcast %31 : vector<1x32x1xf32> to vector<1x32x256xf32>
    %33 = arith.mulf %0, %32 : vector<1x32x256xf32>
    %cst_19 = arith.constant dense<0.000000e+00> : vector<1x256xf32>
    %34 = vector.multi_reduction <add>, %33, %cst_19 [1] : vector<1x32x256xf32> to vector<1x256xf32>
    %35 = vector.shape_cast %34 : vector<1x256xf32> to vector<1x1x256xf32>
    %c0_20 = arith.constant 0 : index
    %36 = memref.load %arg7[%c0_20] : memref<1xf32, #tpu.memory_space<smem>>
    %37 = vector.broadcast %36 : f32 to vector<1x1x256xf32>
    %38 = arith.addf %35, %37 : vector<1x1x256xf32>
    %cst_21 = arith.constant 0.000000e+00 : f32
    %39 = vector.broadcast %cst_21 : f32 to vector<1x1x256xf32>
    %40 = arith.subf %39, %38 : vector<1x1x256xf32>
    %41 = math.exp %40 : vector<1x1x256xf32>
    %cst_22 = arith.constant 1.000000e+00 : f32
    %42 = vector.broadcast %cst_22 : f32 to vector<1x1x256xf32>
    %43 = arith.addf %42, %41 : vector<1x1x256xf32>
    %cst_23 = arith.constant 1.000000e+00 : f32
    %44 = vector.broadcast %cst_23 : f32 to vector<1x1x256xf32>
    %45 = arith.divf %44, %43 : vector<1x1x256xf32>
    %46 = vector.broadcast %29 : vector<1x32x1xf32> to vector<1x32x256xf32>
    %47 = vector.broadcast %45 : vector<1x1x256xf32> to vector<1x32x256xf32>
    %48 = arith.addf %46, %47 : vector<1x32x256xf32>
    %49 = arith.mulf %0, %48 : vector<1x32x256xf32>
    %c0_24 = arith.constant 0 : index
    %c0_25 = arith.constant 0 : index
    %c0_26 = arith.constant 0 : index
    %50 = vector.load %arg8[%c0_24, %c0_25, %c0_26] : memref<1x32x256xf32, #tpu.memory_space<vmem>>, vector<1x32x256xf32>
    tpu.vector_store %arg8[%c0_24, %c0_25, %c0_26], %49 {strides = array<i32>} : memref<1x32x256xf32, #tpu.memory_space<vmem>>, vector<1x32x256xf32>,
    return
  }
  func.func @transform_0(%arg0: i32) -> (i32, i32, i32) {
    %c0_i32 = arith.constant 0 : i32
    %c0_i32_0 = arith.constant 0 : i32
    %c0_i32_1 = arith.constant 0 : i32
    return %arg0, %c0_i32, %c0_i32_0 : i32, i32, i32
  }
  func.func @transform_1(%arg0: i32) -> (i32, i32) {
    %c0_i32 = arith.constant 0 : i32
    %c0_i32_0 = arith.constant 0 : i32
    %c0_i32_1 = arith.constant 0 : i32
    return %c0_i32, %c0_i32_0 : i32, i32
  }
  func.func @transform_2(%arg0: i32) -> (i32, i32) {
    %c0_i32 = arith.constant 0 : i32
    %c0_i32_0 = arith.constant 0 : i32
    %c0_i32_1 = arith.constant 0 : i32
    return %c0_i32, %c0_i32_0 : i32, i32
  }
  func.func @transform_3(%arg0: i32) -> (i32, i32) {
    %c0_i32 = arith.constant 0 : i32
    %c0_i32_0 = arith.constant 0 : i32
    %c0_i32_1 = arith.constant 0 : i32
    return %c0_i32, %c0_i32_0 : i32, i32
  }
  func.func @transform_4(%arg0: i32) -> (i32, i32) {
    %c0_i32 = arith.constant 0 : i32
    %c0_i32_0 = arith.constant 0 : i32
    %c0_i32_1 = arith.constant 0 : i32
    return %c0_i32, %c0_i32_0 : i32, i32
  }
  func.func @transform_5(%arg0: i32) -> (i32, i32) {
    %c0_i32 = arith.constant 0 : i32
    %c0_i32_0 = arith.constant 0 : i32
    %c0_i32_1 = arith.constant 0 : i32
    return %c0_i32, %c0_i32_0 : i32, i32
  }
  func.func @transform_6(%arg0: i32) -> i32 {
    %c0_i32 = arith.constant 0 : i32
    %c0_i32_0 = arith.constant 0 : i32
    return %c0_i32 : i32
  }
  func.func @transform_7(%arg0: i32) -> (i32, i32, i32) {
    %c0_i32 = arith.constant 0 : i32
    %c0_i32_0 = arith.constant 0 : i32
    %c0_i32_1 = arith.constant 0 : i32
    return %arg0, %c0_i32, %c0_i32_0 : i32, i32, i32
  }
}

</mosaic_0001>

<llo_original>
// kernel: scse_forward.1
$region0: #{scse_forward.1}
  #allocation0 [shape = 'u32[]', space=smem, size = 0x4, offset = 0x4, fixed_abs, tag = 'smem constant byte address 0x4 - core index']
  #allocation1 [shape = 'u32[144,128]{1,0:T(1,128)}', space=vmem, size = 0x12000, scoped, tag = 'internal scratch']
  #allocation2 [shape = 'f32[1]{0:T(128)S(6)}', space=smem, size = 0x200, scoped, tag = 'scoped memory for scse_forward.1']
  %s0 = inlined_call_operand.vmem [shape: f32[2,32,256], index: 0, kind: input, shape index: {}, may-alias: {0,7}]
  %s1 = inlined_call_operand.vmem [shape: f32[2,32], index: 1, kind: input, shape index: {}]
  %s2 = inlined_call_operand.vmem [shape: f32[1,2], index: 2, kind: input, shape index: {}]
  %s3 = inlined_call_operand.vmem [shape: f32[2,32], index: 3, kind: input, shape index: {}]
  %s4 = inlined_call_operand.vmem [shape: f32[1,32], index: 4, kind: input, shape index: {}]
  %s5 = inlined_call_operand.vmem [shape: f32[32,1], index: 5, kind: input, shape index: {}]
  %s6 = inlined_call_operand.<no memory space> [shape: f32[1], index: 6, kind: input, shape index: {}]
  %s7 = inlined_call_operand.vmem [shape: f32[2,32,256], index: 7, kind: output, shape index: {}, may-alias: {0,7}]
  %s8 = sld [smem:[#allocation0]]
  $region61: #{scse_forward.1} parent=0
    _
  %s10 = ssub.s32 1, %s8
  %s11 = scalar_select 0, %s10, %s8
  %12 = sst [smem:[#allocation2]] %s6
  loop: start=0, step=1, limit=4
  $region2: #{scse_forward.1} parent=0 // loop_pre_header
    _
  $region3: #{scse_forward.1} parent=0 // loop_header
    %s14 = sphi 0, %s18
    %p15 = scmp.ge.s32.totalorder %s14, 4
    %s24 = sphi 0, %s26
    %s27 = sphi 0, %s24
    %s28 = sphi 0, %s27
    %s44 = sphi 0, %s28
    %s48 = sphi 0, %s48
    %s50 = sphi 0, %s48
    %s51 = sphi 0, %s50
    %s65 = sphi 0, %s51
    %s69 = sphi 0, %s69
    %s71 = sphi 0, %s69
    %s72 = sphi 0, %s71
    %s86 = sphi 0, %s72
    %s90 = sphi 0, %s90
    %s92 = sphi 0, %s90
    %s93 = sphi 0, %s92
    %s107 = sphi 0, %s93
    %s111 = sphi 0, %s111
    %s113 = sphi 0, %s111
    %s114 = sphi 0, %s113
    %s128 = sphi 0, %s114
    %s132 = sphi 0, %s132
    %s134 = sphi 0, %s132
    %s135 = sphi 0, %s134
    %s149 = sphi 0, %s135
    %s153 = sphi 0, %s153
    %s155 = sphi 0, %s153
    %s156 = sphi 0, %s155
    %s170 = sphi 0, %s156
    %s176 = sphi 0, %s178
    %s179 = sphi 0, %s176
    %s180 = sphi 0, %s179
    %s196 = sphi 0, %s180
  $region4: #{scse_forward.1} parent=0 // loop_header_branch
    %17 = sbr.rel (%p15) target = $region8
  $region5: #{scse_forward.1} parent=0 // loop_body
    %s19 = ssub.s32 %s14, 1
    %s20 = ssub.s32 %s14, 2
    %s21 = sadd.s32 %s14, 1
    %s22 = ssub.s32 %s14, %s21
    %p23 = scmp.eq.s32.totalorder %s22, 0
    %s25 = sadd.s32 %s24, 1
    %s26 = scalar_select %p23, %s24, %s25
    %p29 = pneg %p23
    %p30 = scmp.eq.s32.totalorder %s14, 1
    %p31 = por %p29, %p30
    %p32 = scmp.ne.s32.totalorder %s24, %s27
    %p33 = scmp.eq.s32.totalorder %s14, 0
    %p34 = por %p32, %p33
    %p35 = scmp.ne.s32.totalorder %s24, %s27
    %p36 = scmp.eq.s32.totalorder %s19, 1
    %p37 = por %p35, %p36
    %p38 = scmp.ne.s32.totalorder %s27, %s28
    %p39 = scmp.eq.s32.totalorder %s19, 0
    %p40 = por %p38, %p39
    %p41 = scmp.ne.s32.totalorder %s27, %s28
    %p42 = scmp.eq.s32.totalorder %s20, 1
    %p43 = por %p41, %p42
    %p45 = scmp.ne.s32.totalorder %s28, %s44
    %p46 = scmp.eq.s32.totalorder %s20, 0
    %p47 = por %p45, %p46
    %s49 = sadd.s32 %s48, 1
    %p52 = scmp.eq.s32.totalorder %s14, 1
    %p53 = scmp.ne.s32.totalorder %s48, %s50
    %p54 = scmp.eq.s32.totalorder %s14, 0
    %p55 = por %p53, %p54
    %p56 = scmp.ne.s32.totalorder %s48, %s50
    %p57 = scmp.eq.s32.totalorder %s19, 1
    %p58 = por %p56, %p57
    %p59 = scmp.ne.s32.totalorder %s50, %s51
    %p60 = scmp.eq.s32.totalorder %s19, 0
    %p61 = por %p59, %p60
    %p62 = scmp.ne.s32.totalorder %s50, %s51
    %p63 = scmp.eq.s32.totalorder %s20, 1
    %p64 = por %p62, %p63
    %p66 = scmp.ne.s32.totalorder %s51, %s65
    %p67 = scmp.eq.s32.totalorder %s20, 0
    %p68 = por %p66, %p67
    %s70 = sadd.s32 %s69, 1
    %p73 = scmp.eq.s32.totalorder %s14, 1
    %p74 = scmp.ne.s32.totalorder %s69, %s71
    %p75 = scmp.eq.s32.totalorder %s14, 0
    %p76 = por %p74, %p75
    %p77 = scmp.ne.s32.totalorder %s69, %s71
    %p78 = scmp.eq.s32.totalorder %s19, 1
    %p79 = por %p77, %p78
    %p80 = scmp.ne.s32.totalorder %s71, %s72
    %p81 = scmp.eq.s32.totalorder %s19, 0
    %p82 = por %p80, %p81
    %p83 = scmp.ne.s32.totalorder %s71, %s72
    %p84 = scmp.eq.s32.totalorder %s20, 1
    %p85 = por %p83, %p84
    %p87 = scmp.ne.s32.totalorder %s72, %s86
    %p88 = scmp.eq.s32.totalorder %s20, 0
    %p89 = por %p87, %p88
    %s91 = sadd.s32 %s90, 1
    %p94 = scmp.eq.s32.totalorder %s14, 1
    %p95 = scmp.ne.s32.totalorder %s90, %s92
    %p96 = scmp.eq.s32.totalorder %s14, 0
    %p97 = por %p95, %p96
    %p98 = scmp.ne.s32.totalorder %s90, %s92
    %p99 = scmp.eq.s32.totalorder %s19, 1
    %p100 = por %p98, %p99
    %p101 = scmp.ne.s32.totalorder %s92, %s93
    %p102 = scmp.eq.s32.totalorder %s19, 0
    %p103 = por %p101, %p102
    %p104 = scmp.ne.s32.totalorder %s92, %s93
    %p105 = scmp.eq.s32.totalorder %s20, 1
    %p106 = por %p104, %p105
    %p108 = scmp.ne.s32.totalorder %s93, %s107
    %p109 = scmp.eq.s32.totalorder %s20, 0
    %p110 = por %p108, %p109
    %s112 = sadd.s32 %s111, 1
    %p115 = scmp.eq.s32.totalorder %s14, 1
    %p116 = scmp.ne.s32.totalorder %s111, %s113
    %p117 = scmp.eq.s32.totalorder %s14, 0
    %p118 = por %p116, %p117
    %p119 = scmp.ne.s32.totalorder %s111, %s113
    %p120 = scmp.eq.s32.totalorder %s19, 1
    %p121 = por %p119, %p120
    %p122 = scmp.ne.s32.totalorder %s113, %s114
    %p123 = scmp.eq.s32.totalorder %s19, 0
    %p124 = por %p122, %p123
    %p125 = scmp.ne.s32.totalorder %s113, %s114
    %p126 = scmp.eq.s32.totalorder %s20, 1
    %p127 = por %p125, %p126
    %p129 = scmp.ne.s32.totalorder %s114, %s128
    %p130 = scmp.eq.s32.totalorder %s20, 0
    %p131 = por %p129, %p130
    %s133 = sadd.s32 %s132, 1
    %p136 = scmp.eq.s32.totalorder %s14, 1
    %p137 = scmp.ne.s32.totalorder %s132, %s134
    %p138 = scmp.eq.s32.totalorder %s14, 0
    %p139 = por %p137, %p138
    %p140 = scmp.ne.s32.totalorder %s132, %s134
    %p141 = scmp.eq.s32.totalorder %s19, 1
    %p142 = por %p140, %p141
    %p143 = scmp.ne.s32.totalorder %s134, %s135
    %p144 = scmp.eq.s32.totalorder %s19, 0
    %p145 = por %p143, %p144
    %p146 = scmp.ne.s32.totalorder %s134, %s135
    %p147 = scmp.eq.s32.totalorder %s20, 1
    %p148 = por %p146, %p147
    %p150 = scmp.ne.s32.totalorder %s135, %s149
    %p151 = scmp.eq.s32.totalorder %s20, 0
    %p152 = por %p150, %p151
    %s154 = sadd.s32 %s153, 1
    %p157 = scmp.eq.s32.totalorder %s14, 1
    %p158 = scmp.ne.s32.totalorder %s153, %s155
    %p159 = scmp.eq.s32.totalorder %s14, 0
    %p160 = por %p158, %p159
    %p161 = scmp.ne.s32.totalorder %s153, %s155
    %p162 = scmp.eq.s32.totalorder %s19, 1
    %p163 = por %p161, %p162
    %p164 = scmp.ne.s32.totalorder %s155, %s156
    %p165 = scmp.eq.s32.totalorder %s19, 0
    %p166 = por %p164, %p165
    %p167 = scmp.ne.s32.totalorder %s155, %s156
    %p168 = scmp.eq.s32.totalorder %s20, 1
    %p169 = por %p167, %p168
    %p171 = scmp.ne.s32.totalorder %s156, %s170
    %p172 = scmp.eq.s32.totalorder %s20, 0
    %p173 = por %p171, %p172
    %s174 = ssub.s32 %s14, %s21
    %p175 = scmp.eq.s32.totalorder %s174, 0
    %s177 = sadd.s32 %s176, 1
    %s178 = scalar_select %p175, %s176, %s177
    %p181 = pneg %p175
    %p182 = scmp.eq.s32.totalorder %s14, 1
    %p183 = por %p181, %p182
    %p184 = scmp.ne.s32.totalorder %s176, %s179
    %p185 = scmp.eq.s32.totalorder %s14, 0
    %p186 = por %p184, %p185
    %p187 = scmp.ne.s32.totalorder %s176, %s179
    %p188 = scmp.eq.s32.totalorder %s19, 1
    %p189 = por %p187, %p188
    %p190 = scmp.ne.s32.totalorder %s179, %s180
    %p191 = scmp.eq.s32.totalorder %s19, 0
    %p192 = por %p190, %p191
    %p193 = scmp.ne.s32.totalorder %s179, %s180
    %p194 = scmp.eq.s32.totalorder %s20, 1
    %p195 = por %p193, %p194
    %p197 = scmp.ne.s32.totalorder %s180, %s196
    %p198 = scmp.eq.s32.totalorder %s20, 0
    %p199 = por %p197, %p198
    %p200 = scmp.le.s32.totalorder 1, %s14
    %p201 = scmp.lt.s32.totalorder %s14, 3
    %p202 = pnand %p200, %p201
    %p203 = pneg %p202
    // Predicated region
    $region9: #{scse_forward.1} parent=5 // pred_check
      _
    $region10: #{scse_forward.1} parent=5 // pred_check_branch
      %205 = sbr.rel (%p202) target = $region12
    $region11: #{scse_forward.1} parent=5 // pred_region
      %s206 = ssub.s32 %s14, 1
      // Predicated region
      $region13: #{scse_forward.1} parent=11 // pred_check
        %p207 = pneg %p61
      $region14: #{scse_forward.1} parent=11 // pred_check_branch
        %209 = sbr.rel (%p207) target = $region16
      $region15: #{scse_forward.1} parent=11 // pred_region
        _
      $region16: #{scse_forward.1} parent=11 // pred_fallthru
        _
      // Predicated region
      $region17: #{scse_forward.1} parent=11 // pred_check
        %p210 = pneg %p82
      $region18: #{scse_forward.1} parent=11 // pred_check_branch
        %212 = sbr.rel (%p210) target = $region20
      $region19: #{scse_forward.1} parent=11 // pred_region
        _
      $region20: #{scse_forward.1} parent=11 // pred_fallthru
        _
      // Predicated region
      $region21: #{scse_forward.1} parent=11 // pred_check
        %p213 = pneg %p103
      $region22: #{scse_forward.1} parent=11 // pred_check_branch
        %215 = sbr.rel (%p213) target = $region24
      $region23: #{scse_forward.1} parent=11 // pred_region
        _
      $region24: #{scse_forward.1} parent=11 // pred_fallthru
        _
      // Predicated region
      $region25: #{scse_forward.1} parent=11 // pred_check
        %p216 = pneg %p124
      $region26: #{scse_forward.1} parent=11 // pred_check_branch
        %218 = sbr.rel (%p216) target = $region28
      $region27: #{scse_forward.1} parent=11 // pred_region
        _
      $region28: #{scse_forward.1} parent=11 // pred_fallthru
        _
      // Predicated region
      $region29: #{scse_forward.1} parent=11 // pred_check
        %p219 = pneg %p145
      $region30: #{scse_forward.1} parent=11 // pred_check_branch
        %221 = sbr.rel (%p219) target = $region32
      $region31: #{scse_forward.1} parent=11 // pred_region
        _
      $region32: #{scse_forward.1} parent=11 // pred_fallthru
        _
      // Predicated region
      $region33: #{scse_forward.1} parent=11 // pred_check
        %p222 = pneg %p166
      $region34: #{scse_forward.1} parent=11 // pred_check_branch
        %224 = sbr.rel (%p222) target = $region36
      $region35: #{scse_forward.1} parent=11 // pred_region
        _
      $region36: #{scse_forward.1} parent=11 // pred_fallthru
        _
    $region12: #{scse_forward.1} parent=5 // pred_fallthru
      _
    %p225 = scmp.lt.s32.totalorder %s14, 2
    // Predicated region
    $region37: #{scse_forward.1} parent=5 // pred_check
      %p226 = pneg %p225
    $region38: #{scse_forward.1} parent=5 // pred_check_branch
      %228 = sbr.rel (%p226) target = $region40
    $region39: #{scse_forward.1} parent=5 // pred_region
      // Predicated region
      $region41: #{scse_forward.1} parent=39 // pred_check
        %p229 = pneg %p34
      $region42: #{scse_forward.1} parent=39 // pred_check_branch
        %231 = sbr.rel (%p229) target = $region44
      $region43: #{scse_forward.1} parent=39 // pred_region
        %p232 = scmp.lt.s32.totalorder %s14, 1
        %s233 = scalar_select %p232, %s14, 1
        %s234 = smul.addr %s233, 8
        %s235 = smul.addr %s234, 8
        %s236 = scalar_lea.vmem %s0, %s235
      $region44: #{scse_forward.1} parent=39 // pred_fallthru
        _
    $region40: #{scse_forward.1} parent=5 // pred_fallthru
      _
    %p237 = scmp.le.s32.totalorder 1, %s14
    %p238 = scmp.lt.s32.totalorder %s14, 3
    %p239 = pnand %p237, %p238
    %p240 = pneg %p239
    // Predicated region
    $region45: #{scse_forward.1} parent=5 // pred_check
      _
    $region46: #{scse_forward.1} parent=5 // pred_check_branch
      %242 = sbr.rel (%p239) target = $region48
    $region47: #{scse_forward.1} parent=5 // pred_region
      %s243 = ssub.s32 %s14, 1
      %p244 = scmp.lt.s32.totalorder %s19, 1
      %s245 = scalar_select %p244, %s19, 1
      %s246 = smul.addr %s245, 8
      %s247 = smul.addr %s246, 8
      %s248 = scalar_lea.vmem %s0, %s247
      %p249 = pneg %p40
      %p250 = pneg %p37
      %p251 = pneg %p61
      %p252 = pneg %p58
      %p253 = pneg %p82
      %p254 = pneg %p79
      %p255 = pneg %p103
      %p256 = pneg %p100
      %p257 = pneg %p124
      %p258 = pneg %p121
      %p259 = pneg %p145
      %p260 = pneg %p142
      %p261 = pneg %p166
      %p262 = pneg %p163
      %p263 = pneg %p192
      %p264 = pneg %p189
      %p265 = scmp.lt.s32.totalorder %s19, 1
      %s266 = scalar_select %p265, %s19, 1
      %s267 = smul.addr %s266, 8
      %s268 = smul.addr %s267, 8
      %s269 = scalar_lea.vmem %s7, %s268
      %p270 = scmp.lt.s32.totalorder %s19, 1
      %s271 = scalar_select %p270, %s19, 1
      %s272 = smul.addr %s271, 8
      %s273 = smul.addr %s272, 8
      %s274 = scalar_lea.vmem %s0, %s273
      %p275 = scmp.lt.s32.totalorder %s19, 1
      %s276 = scalar_select %p275, %s19, 1
      %s277 = smul.addr %s276, 8
      %s278 = smul.addr %s277, 8
      %s279 = scalar_lea.vmem %s7, %s278
      %v280 = vld [vmem:[%s274] sm:$0xff]
      %v281 = vld [vmem:[%s274 + $0x8] sm:$0xff]
      %v282 = vld [vmem:[%s274 + $0x10] sm:$0xff]
      %v283 = vld [vmem:[%s274 + $0x18] sm:$0xff]
      %v284 = vld [vmem:[%s274 + $0x20] sm:$0xff]
      %v285 = vld [vmem:[%s274 + $0x28] sm:$0xff]
      %v286 = vld [vmem:[%s274 + $0x30] sm:$0xff]
      %v287 = vld [vmem:[%s274 + $0x38] sm:$0xff]
      %v288 = vadd.f32 %v280, %v281
      %289 = vadd.xlane.f32.xlu0 %v288
      %v290 = vpop.xlane.xlu0 %289
      %v291 = vadd.f32 %v282, %v283
      %292 = vadd.xlane.f32.xlu0 %v291
      %v293 = vpop.xlane.xlu0 %292
      %v294 = vadd.f32 %v284, %v285
      %295 = vadd.xlane.f32.xlu0 %v294
      %v296 = vpop.xlane.xlu0 %295
      %v297 = vadd.f32 %v286, %v287
      %298 = vadd.xlane.f32.xlu0 %v297
      %v299 = vpop.xlane.xlu0 %298
      %v300 = vmul.f32 %v290, 0.00390625
      %v301 = vmul.f32 %v293, 0.00390625
      %v302 = vmul.f32 %v296, 0.00390625
      %v303 = vmul.f32 %v299, 0.00390625
      %v304 = vld [vmem:[%s1] sm:$0x3]
      %v306 = vlaneseq
      %v307 = vshrl.u32 %v306, 7
      %v308 = vsub.s32 0, %v307
      %v309 = vrot.slane %v304, %v308
      %311 = vbcast.lane.b32.xlu0 %v309, 256
      %v312 = vpop.permute.xlu0 %311
      %s314 = sor.u32 256, 8
      %315 = vbcast.lane.b32.xlu0 %v309, %s314
      %v316 = vpop.permute.xlu0 %315
      %s318 = sor.u32 256, 16
      %319 = vbcast.lane.b32.xlu0 %v309, %s318
      %v320 = vpop.permute.xlu0 %319
      %s322 = sor.u32 256, 24
      %323 = vbcast.lane.b32.xlu0 %v309, %s322
      %v324 = vpop.permute.xlu0 %323
      %v325 = vlaneseq
      %v326 = vshrl.u32 %v325, 7
      %v327 = vsub.s32 1, %v326
      %v328 = vrot.slane %v304, %v327
      %330 = vbcast.lane.b32.xlu0 %v328, 256
      %v331 = vpop.permute.xlu0 %330
      %s333 = sor.u32 256, 8
      %334 = vbcast.lane.b32.xlu0 %v328, %s333
      %v335 = vpop.permute.xlu0 %334
      %s337 = sor.u32 256, 16
      %338 = vbcast.lane.b32.xlu0 %v328, %s337
      %v339 = vpop.permute.xlu0 %338
      %s341 = sor.u32 256, 24
      %342 = vbcast.lane.b32.xlu0 %v328, %s341
      %v343 = vpop.permute.xlu0 %342
      %v352 = vmul.f32 %v300, %v312
      %v353 = vmul.f32 %v301, %v316
      %v354 = vmul.f32 %v302, %v320
      %v355 = vmul.f32 %v303, %v324
      %v356 = vmul.f32 %v300, %v331
      %v357 = vmul.f32 %v301, %v335
      %v358 = vmul.f32 %v302, %v339
      %v359 = vmul.f32 %v303, %v343
      %368 = vset.pattern.permute.xlu0 0
      %369 = vperm.xlu0 %368, %v352
      %v370 = vpop.permute.xlu0 %369
      %371 = vset.pattern.permute.xlu0 0
      %372 = vperm.xlu0 %371, %v353
      %v373 = vpop.permute.xlu0 %372
      %374 = vset.pattern.permute.xlu0 0
      %375 = vperm.xlu0 %374, %v354
      %v376 = vpop.permute.xlu0 %375
      %377 = vset.pattern.permute.xlu0 0
      %378 = vperm.xlu0 %377, %v355
      %v379 = vpop.permute.xlu0 %378
      %380 = vset.pattern.permute.xlu0 0
      %381 = vperm.xlu0 %380, %v356
      %v382 = vpop.permute.xlu0 %381
      %383 = vset.pattern.permute.xlu0 0
      %384 = vperm.xlu0 %383, %v357
      %v385 = vpop.permute.xlu0 %384
      %386 = vset.pattern.permute.xlu0 0
      %387 = vperm.xlu0 %386, %v358
      %v388 = vpop.permute.xlu0 %387
      %389 = vset.pattern.permute.xlu0 0
      %390 = vperm.xlu0 %389, %v359
      %v391 = vpop.permute.xlu0 %390
      %v392 = vlaneseq
      %v393 = vand.u32 %v392, 127
      %v394 = vlaneseq
      %v395 = vshrl.u32 %v394, 7
      %v396 = vsub.s32 %v393, %v395
      %v397 = vrot.slane %v370, %v396
      %v398 = vadd.s32 %v393, 4294967288
      %v399 = vlaneseq
      %v400 = vshrl.u32 %v399, 7
      %v401 = vsub.s32 %v398, %v400
      %v402 = vrot.slane %v373, %v401
      %vm403 = vcmask 130112
      %v404 = vsel %vm403, %v402, %v397
      %v405 = vadd.s32 %v393, 4294967280
      %v406 = vlaneseq
      %v407 = vshrl.u32 %v406, 7
      %v408 = vsub.s32 %v405, %v407
      %v409 = vrot.slane %v376, %v408
      %vm410 = vcmask 195712
      %v411 = vsel %vm410, %v409, %v404
      %v412 = vadd.s32 %v393, 4294967272
      %v413 = vlaneseq
      %v414 = vshrl.u32 %v413, 7
      %v415 = vsub.s32 %v412, %v414
      %v416 = vrot.slane %v379, %v415
      %vm417 = vcmask 261312
      %v418 = vsel %vm417, %v416, %v411
      %v419 = vlaneseq
      %v420 = vshrl.u32 %v419, 7
      %v421 = vsub.s32 %v393, %v420
      %v422 = vrot.slane %v382, %v421
      %v423 = vlaneseq
      %v424 = vshrl.u32 %v423, 7
      %v425 = vsub.s32 %v398, %v424
      %v426 = vrot.slane %v385, %v425
      %v427 = vsel %vm403, %v426, %v422
      %v428 = vlaneseq
      %v429 = vshrl.u32 %v428, 7
      %v430 = vsub.s32 %v405, %v429
      %v431 = vrot.slane %v388, %v430
      %v432 = vsel %vm410, %v431, %v427
      %v433 = vlaneseq
      %v434 = vshrl.u32 %v433, 7
      %v435 = vsub.s32 %v412, %v434
      %v436 = vrot.slane %v391, %v435
      %v437 = vsel %vm417, %v436, %v432
      %vm438 = vcmask 1041409
      %v439 = vsel %vm438, %v437, %v418
      %vm441 = vcmask 254976
      %v442 = vsel %vm441, %v439, 0.0
      %443 = vadd.xlane.f32.xlu0 %v442
      %v444 = vpop.xlane.xlu0 %443
      %v445 = vld [vmem:[%s2] sm:$0x1]
      %v447 = vlaneseq
      %v448 = vshrl.u32 %v447, 7
      %v449 = vsub.s32 0, %v448
      %v450 = vrot.slane %v445, %v449
      %452 = vbcast.lane.b32.xlu0 %v450, 256
      %v453 = vpop.permute.xlu0 %452
      %v455 = vadd.f32 %v444, %v453
      %v456 = vmax.f32 %v455, 0.0
      %v457 = vld [vmem:[%s3] sm:$0x3]
      %459 = vset.pattern.permute.xlu0 0
      %460 = vperm.xlu0 %459, %v456
      %v461 = vpop.permute.xlu0 %460
      %v463 = vmul.f32 %v461, %v457
      %v464 = vsel %vm441, %v463, 0.0
      %v465 = vrot.slane %v464, 4
      %v466 = vadd.f32 %v464, %v465
      %v467 = vrot.slane %v466, 2
      %v468 = vadd.f32 %v466, %v467
      %v469 = vrot.slane %v468, 1
      %v470 = vadd.f32 %v468, %v469
      %v471 = vld [vmem:[%s4] sm:$0x1]
      %v472 = vadd.f32 %v470, %v471
      %v473 = vsub.f32 0.0, %v472
      %v474 = vmul.f32 %v473, 1.442695
      %v475 = vpow.pop %v474
      %v476 = vadd.f32 %v475, 1.0
      %v477 = vrcp.pop %v476
      %v478 = vmul.f32 1.0, %v477
      %v479 = vlaneseq
      %v480 = vshrl.u32 %v479, 7
      %v481 = vsub.s32 0, %v480
      %v482 = vrot.slane %v478, %v481
      %484 = vbcast.lane.b32.xlu0 %v482, 256
      %v485 = vpop.permute.xlu0 %484
      %s487 = sor.u32 256, 8
      %488 = vbcast.lane.b32.xlu0 %v482, %s487
      %v489 = vpop.permute.xlu0 %488
      %s491 = sor.u32 256, 16
      %492 = vbcast.lane.b32.xlu0 %v482, %s491
      %v493 = vpop.permute.xlu0 %492
      %s495 = sor.u32 256, 24
      %496 = vbcast.lane.b32.xlu0 %v482, %s495
      %v497 = vpop.permute.xlu0 %496
      %v498 = vld [vmem:[%s5] sm:$0xff]
      %v499 = vld [vmem:[%s5 + $0x8] sm:$0xff]
      %v500 = vld [vmem:[%s5 + $0x10] sm:$0xff]
      %v501 = vld [vmem:[%s5 + $0x18] sm:$0xff]
      %503 = vset.pattern.permute.xlu0 0
      %504 = vperm.xlu0 %503, %v498
      %v505 = vpop.permute.xlu0 %504
      %508 = vset.pattern.permute.xlu0 0
      %509 = vperm.xlu0 %508, %v499
      %v510 = vpop.permute.xlu0 %509
      %513 = vset.pattern.permute.xlu0 0
      %514 = vperm.xlu0 %513, %v500
      %v515 = vpop.permute.xlu0 %514
      %518 = vset.pattern.permute.xlu0 0
      %519 = vperm.xlu0 %518, %v501
      %v520 = vpop.permute.xlu0 %519
      %v522 = vmul.f32 %v280, %v505
      %v523 = vmul.f32 %v281, %v505
      %v524 = vmul.f32 %v282, %v510
      %v525 = vmul.f32 %v283, %v510
      %v526 = vmul.f32 %v284, %v515
      %v527 = vmul.f32 %v285, %v515
      %v528 = vmul.f32 %v286, %v520
      %v529 = vmul.f32 %v287, %v520
      %v530 = vadd.f32 %v522, %v524
      %v531 = vadd.f32 %v530, %v526
      %v532 = vadd.f32 %v531, %v528
      %v533 = vrot.slane %v532, 4
      %v534 = vadd.f32 %v532, %v533
      %v535 = vrot.slane %v534, 2
      %v536 = vadd.f32 %v534, %v535
      %v537 = vrot.slane %v536, 1
      %v538 = vadd.f32 %v536, %v537
      %v539 = vadd.f32 %v523, %v525
      %v540 = vadd.f32 %v539, %v527
      %v541 = vadd.f32 %v540, %v529
      %v542 = vrot.slane %v541, 4
      %v543 = vadd.f32 %v541, %v542
      %v544 = vrot.slane %v543, 2
      %v545 = vadd.f32 %v543, %v544
      %v546 = vrot.slane %v545, 1
      %v547 = vadd.f32 %v545, %v546
      %s548 = sld [smem:[#allocation2]]
      %v549 = vstv %s548
      %v550 = vadd.f32 %v538, %v549
      %v551 = vadd.f32 %v547, %v549
      %v552 = vsub.f32 0.0, %v550
      %v553 = vsub.f32 0.0, %v551
      %v554 = vmul.f32 %v552, 1.442695
      %v555 = vpow.pop %v554
      %v556 = vmul.f32 %v553, 1.442695
      %v557 = vpow.pop %v556
      %v558 = vadd.f32 %v555, 1.0
      %v559 = vadd.f32 %v557, 1.0
      %v560 = vrcp.pop %v558
      %v561 = vmul.f32 1.0, %v560
      %v562 = vrcp.pop %v559
      %v563 = vmul.f32 1.0, %v562
      %v564 = vadd.f32 %v485, %v561
      %v565 = vadd.f32 %v485, %v563
      %v566 = vadd.f32 %v489, %v561
      %v567 = vadd.f32 %v489, %v563
      %v568 = vadd.f32 %v493, %v561
      %v569 = vadd.f32 %v493, %v563
      %v570 = vadd.f32 %v497, %v561
      %v571 = vadd.f32 %v497, %v563
      %v572 = vmul.f32 %v280, %v564
      %v573 = vmul.f32 %v281, %v565
      %v574 = vmul.f32 %v282, %v566
      %v575 = vmul.f32 %v283, %v567
      %v576 = vmul.f32 %v284, %v568
      %v577 = vmul.f32 %v285, %v569
      %v578 = vmul.f32 %v286, %v570
      %v579 = vmul.f32 %v287, %v571
      %580 = vst [vmem:[%s279] sm:$0xff] %v572
      %581 = vst [vmem:[%s279 + $0x8] sm:$0xff] %v573
      %582 = vst [vmem:[%s279 + $0x10] sm:$0xff] %v574
      %583 = vst [vmem:[%s279 + $0x18] sm:$0xff] %v575
      %584 = vst [vmem:[%s279 + $0x20] sm:$0xff] %v576
      %585 = vst [vmem:[%s279 + $0x28] sm:$0xff] %v577
      %586 = vst [vmem:[%s279 + $0x30] sm:$0xff] %v578
      %587 = vst [vmem:[%s279 + $0x38] sm:$0xff] %v579
      %p588 = scmp.lt.s32.totalorder %s19, 1
      %s589 = scalar_select %p588, %s19, 1
      %s590 = smul.addr %s589, 8
      %s591 = smul.addr %s590, 8
      %s592 = scalar_lea.vmem %s7, %s591
      // Predicated region
      $region49: #{scse_forward.1} parent=47 // pred_check
        %p593 = pneg %p189
      $region50: #{scse_forward.1} parent=47 // pred_check_branch
        %595 = sbr.rel (%p593) target = $region52
      $region51: #{scse_forward.1} parent=47 // pred_region
        _
      $region52: #{scse_forward.1} parent=47 // pred_fallthru
        _
    $region48: #{scse_forward.1} parent=5 // pred_fallthru
      _
    %p596 = scmp.le.s32.totalorder 2, %s14
    // Predicated region
    $region53: #{scse_forward.1} parent=5 // pred_check
      %p597 = pneg %p596
    $region54: #{scse_forward.1} parent=5 // pred_check_branch
      %599 = sbr.rel (%p597) target = $region56
    $region55: #{scse_forward.1} parent=5 // pred_region
      %s600 = ssub.s32 %s14, 2
      // Predicated region
      $region57: #{scse_forward.1} parent=55 // pred_check
        %p601 = pneg %p195
      $region58: #{scse_forward.1} parent=55 // pred_check_branch
        %603 = sbr.rel (%p601) target = $region60
      $region59: #{scse_forward.1} parent=55 // pred_region
        %p604 = scmp.lt.s32.totalorder %s20, 1
        %s605 = scalar_select %p604, %s20, 1
        %s606 = smul.addr %s605, 8
        %s607 = smul.addr %s606, 8
        %s608 = scalar_lea.vmem %s7, %s607
      $region60: #{scse_forward.1} parent=55 // pred_fallthru
        _
    $region56: #{scse_forward.1} parent=5 // pred_fallthru
      _
  $region6: #{scse_forward.1} parent=0 // loop_footer
    %s18 = sadd.s32 1, %s14
  $region7: #{scse_forward.1} parent=0 // loop_footer_branch
    %13 = sbr.rel target = $region3
  $region8: #{scse_forward.1} parent=0 // loop_exit
    _

</llo_original>
